<compile_context>
chip_gen: v5e
topology: v5e:2x2
jax: 0.10.0
libtpu: 0.0.40
codegen_flags: <defaults>
</compile_context>

<pallas_src>
import functools

import jax
import jax.numpy as jnp
import numpy as np
from jax.experimental import pallas as pl
from jax.experimental.pallas import tpu as pltpu

_K_IN = 8  # padded contraction width for the x outer product (sublane multiple)


def _vanilla_rnn_kernel(seq_len, bp, x_ref, w_hx_ref, w_hh_t_ref, b_h_ref,
                        w_ph_ref, b_p_ref, out_ref):
    # x_ref:      (T*Bp, 8)  time-major input, value replicated along K=8
    # w_hx_ref:   (8, H)     row 0 = W_hx^T, rows 1..7 = 0
    # w_hh_t_ref: (H, H)     W_hh^T (transposed once at prep time)
    # b_h_ref:    (1, H)
    # w_ph_ref:   (H, Cp)    lane-padded output projection
    # b_p_ref:    (1, Cp)
    # out_ref:    (Bp, Cp)
    w_hh_t = w_hh_t_ref[...]                     # (H, H), loaded once

    # Input contribution + bias for every timestep with ONE MXU matmul:
    #   z[t*Bp + b, :] = x[b, t] * W_hx^T + b_h   -> (T*Bp, H), lane dense.
    # This keeps the lane-broadcast work off the VPU/XLU and off the serial
    # recurrence chain entirely.
    z = jnp.dot(x_ref[...], w_hx_ref[...],
                preferred_element_type=jnp.float32) + b_h_ref[...]

    # h_0 == 0, so step 0 is just tanh(z[0]).
    h = jnp.tanh(z[0:bp, :])                     # (Bp, H)

    # Statically unrolled recurrence; the serial chain per step is only
    # h -> MXU dot -> add -> tanh.  z_t is a static sublane-aligned slice
    # (each Bp=8 row-group is a whole vreg for H <= 128).
    for t in range(1, seq_len):
        hh = jnp.dot(h, w_hh_t, preferred_element_type=jnp.float32)
        h = jnp.tanh(z[t * bp:(t + 1) * bp, :] + hh)

    # Output projection; Cp is lane-padded so the final store is unmasked.
    p = jnp.dot(h, w_ph_ref[...], preferred_element_type=jnp.float32) + b_p_ref[...]
    out_ref[...] = p.astype(out_ref.dtype)


def make_vanilla_rnn_forward(w_hx, w_hh, bias_h, w_ph, bias_p):
    """Does all weight layout plumbing ONCE and returns a jitted forward(x)."""
    num_hidden = w_hh.shape[0]
    num_classes = w_ph.shape[1]
    c_pad = (-num_classes) % 128          # lane multiple for the output
    cp = num_classes + c_pad

    # ---- one-time parameter layout plumbing (hoisted out of the call path) ----
    w_hx_row = jnp.asarray(w_hx, jnp.float32).reshape(1, num_hidden)      # W_hx^T
    w_hx_k = jnp.concatenate(
        [w_hx_row, jnp.zeros((_K_IN - 1, num_hidden), jnp.float32)], axis=0)  # (8, H)
    w_hh_t = jnp.asarray(w_hh, jnp.float32).T                             # (H, H)
    b_h = jnp.asarray(bias_h, jnp.float32).reshape(1, num_hidden)         # (1, H)
    w_ph_p = jnp.pad(jnp.asarray(w_ph, jnp.float32), ((0, 0), (0, c_pad)))  # (H, Cp)
    b_p_p = jnp.pad(jnp.asarray(bias_p, jnp.float32), (0, c_pad)).reshape(1, cp)

    @jax.jit
    def forward(x):
        batch, seq_len = x.shape
        bp = batch + (-batch) % 8                     # sublane-pad batch

        # Per-call x layout (fused into a single small HLO fusion under jit):
        # (B, T) -> pad -> (Bp, T) -> time-major (T*Bp, 1) -> replicate K=8.
        xf = jnp.asarray(x, jnp.float32)
        x_tm = jnp.pad(xf, ((0, bp - batch), (0, 0))).T.reshape(seq_len * bp, 1)
        x_k = jnp.broadcast_to(x_tm, (seq_len * bp, _K_IN))

        flops = (2 * seq_len * bp * _K_IN * num_hidden                 # z outer product
                 + (seq_len - 1) * 2 * bp * num_hidden * num_hidden    # recurrence
                 + 2 * seq_len * bp * num_hidden                       # adds
                 + 2 * bp * num_hidden * cp + bp * cp)                 # projection
        transcendentals = seq_len * bp * num_hidden
        bytes_accessed = 4 * (x_k.size + w_hx_k.size + w_hh_t.size + b_h.size
                              + w_ph_p.size + b_p_p.size + bp * cp)

        vmem = pl.BlockSpec(memory_space=pltpu.MemorySpace.VMEM)
        out_padded = pl.pallas_call(
            functools.partial(_vanilla_rnn_kernel, seq_len, bp),
            out_shape=jax.ShapeDtypeStruct((bp, cp), jnp.float32),
            in_specs=[vmem] * 6,
            out_specs=vmem,
            cost_estimate=pl.CostEstimate(flops=flops,
                                          transcendentals=transcendentals,
                                          bytes_accessed=bytes_accessed),
        )(x_k, w_hx_k, w_hh_t, b_h, w_ph_p, b_p_p)

        # Un-pad.  (Consumers that can read padded logits may take out_padded
        # directly; this slice is a single tiny HLO.)
        return out_padded[:batch, :num_classes]

    return forward


def vanilla_rnn_reference(x, w_hx, w_hh, bias_h, w_ph, bias_p):
    """Pure-JAX reference mirroring the PyTorch loop exactly (all f32)."""
    batch, seq_length = x.shape
    num_hidden = w_hh.shape[0]
    h = jnp.zeros((num_hidden, batch), jnp.float32)   # (H, B), like torch code
    for i in range(seq_length):
        x_i = x[:, i].reshape(-1, 1)                  # (B, 1)
        xh = x_i @ w_hx.T                             # (B, H)
        hh = (w_hh @ h).T + bias_h                    # (B, H)
        h_bm = jnp.tanh(xh + hh)                      # (B, H)
        h = h_bm.T                                    # (H, B)
    return h.T @ w_ph + bias_p                        # (B, C)


if __name__ == "__main__":
    # Shapes implied by the module's forward (input_dim == 1).
    seq_length = 8
    input_dim = 1
    num_hidden = 32
    num_classes = 10
    batch_size = 2

    key = jax.random.PRNGKey(0)
    k_x, k_whx, k_whh, k_wph = jax.random.split(key, 4)

    x = jax.random.normal(k_x, (batch_size, seq_length), dtype=jnp.float32)

    # Deterministic parameter init (matching torch.randn / torch.zeros shapes).
    w_hx = jax.random.normal(k_whx, (num_hidden, input_dim), dtype=jnp.float32)
    w_hh = jax.random.normal(k_whh, (num_hidden, num_hidden), dtype=jnp.float32)
    bias_h = jnp.zeros((num_hidden,), dtype=jnp.float32)
    w_ph = jax.random.normal(k_wph, (num_hidden, num_classes), dtype=jnp.float32)
    bias_p = jnp.zeros((num_classes,), dtype=jnp.float32)

    # One-time prep (all weight relayout/padding), then a jit that only takes x.
    forward = make_vanilla_rnn_forward(w_hx, w_hh, bias_h, w_ph, bias_p)
    out = jax.block_until_ready(forward(x))

    ref = vanilla_rnn_reference(x, w_hx, w_hh, bias_h, w_ph, bias_p)
    np.testing.assert_allclose(np.asarray(out), np.asarray(ref),
                               rtol=1e-4, atol=1e-4)
    print("KERNEL_OK")
</pallas_src>

<mosaic_0001>
module attributes {stable_mosaic.version = 11 : i64} {
  func.func @_vanilla_rnn_kernel(%arg0: memref<64x8xf32, #tpu.memory_space<vmem>>, %arg1: memref<8x32xf32, #tpu.memory_space<vmem>>, %arg2: memref<32x32xf32, #tpu.memory_space<vmem>>, %arg3: memref<1x32xf32, #tpu.memory_space<vmem>>, %arg4: memref<32x128xf32, #tpu.memory_space<vmem>>, %arg5: memref<1x128xf32, #tpu.memory_space<vmem>>, %arg6: memref<8x128xf32, #tpu.memory_space<vmem>>) attributes {dimension_semantics = [], scalar_prefetch = 0 : i64, scratch_operands = 0 : i64, tpu.core_type = #tpu.core_type<tc>} {
    %c0 = arith.constant 0 : index
    %c0_0 = arith.constant 0 : index
    %0 = vector.load %arg2[%c0, %c0_0] : memref<32x32xf32, #tpu.memory_space<vmem>>, vector<32x32xf32>
    %c0_1 = arith.constant 0 : index
    %c0_2 = arith.constant 0 : index
    %1 = vector.load %arg0[%c0_1, %c0_2] : memref<64x8xf32, #tpu.memory_space<vmem>>, vector<64x8xf32>
    %c0_3 = arith.constant 0 : index
    %c0_4 = arith.constant 0 : index
    %2 = vector.load %arg1[%c0_3, %c0_4] : memref<8x32xf32, #tpu.memory_space<vmem>>, vector<8x32xf32>
    %cst = arith.constant dense<0.000000e+00> : vector<64x32xf32>
    %3 = tpu.matmul %1, %2, %cst {dimension_numbers = #tpu.dot_dimension_numbers<[1], [0], [0], [1], [0, 0, 1, 1], [], []>} : vector<64x8xf32>, vector<8x32xf32>, vector<64x32xf32> -> vector<64x32xf32>
    %c0_5 = arith.constant 0 : index
    %c0_6 = arith.constant 0 : index
    %4 = vector.load %arg3[%c0_5, %c0_6] : memref<1x32xf32, #tpu.memory_space<vmem>>, vector<1x32xf32>
    %5 = vector.broadcast %4 : vector<1x32xf32> to vector<64x32xf32>
    %6 = arith.addf %3, %5 : vector<64x32xf32>
    %7 = vector.extract_strided_slice %6 {offsets = [0, 0], sizes = [8, 32], strides = [1, 1]} : vector<64x32xf32> to vector<8x32xf32>
    %8 = math.tanh %7 : vector<8x32xf32>
    %cst_7 = arith.constant dense<0.000000e+00> : vector<8x32xf32>
    %9 = tpu.matmul %8, %0, %cst_7 {dimension_numbers = #tpu.dot_dimension_numbers<[1], [0], [0], [1], [0, 0, 1, 1], [], []>} : vector<8x32xf32>, vector<32x32xf32>, vector<8x32xf32> -> vector<8x32xf32>
    %10 = vector.extract_strided_slice %6 {offsets = [8, 0], sizes = [8, 32], strides = [1, 1]} : vector<64x32xf32> to vector<8x32xf32>
    %11 = arith.addf %10, %9 : vector<8x32xf32>
    %12 = math.tanh %11 : vector<8x32xf32>
    %cst_8 = arith.constant dense<0.000000e+00> : vector<8x32xf32>
    %13 = tpu.matmul %12, %0, %cst_8 {dimension_numbers = #tpu.dot_dimension_numbers<[1], [0], [0], [1], [0, 0, 1, 1], [], []>} : vector<8x32xf32>, vector<32x32xf32>, vector<8x32xf32> -> vector<8x32xf32>
    %14 = vector.extract_strided_slice %6 {offsets = [16, 0], sizes = [8, 32], strides = [1, 1]} : vector<64x32xf32> to vector<8x32xf32>
    %15 = arith.addf %14, %13 : vector<8x32xf32>
    %16 = math.tanh %15 : vector<8x32xf32>
    %cst_9 = arith.constant dense<0.000000e+00> : vector<8x32xf32>
    %17 = tpu.matmul %16, %0, %cst_9 {dimension_numbers = #tpu.dot_dimension_numbers<[1], [0], [0], [1], [0, 0, 1, 1], [], []>} : vector<8x32xf32>, vector<32x32xf32>, vector<8x32xf32> -> vector<8x32xf32>
    %18 = vector.extract_strided_slice %6 {offsets = [24, 0], sizes = [8, 32], strides = [1, 1]} : vector<64x32xf32> to vector<8x32xf32>
    %19 = arith.addf %18, %17 : vector<8x32xf32>
    %20 = math.tanh %19 : vector<8x32xf32>
    %cst_10 = arith.constant dense<0.000000e+00> : vector<8x32xf32>
    %21 = tpu.matmul %20, %0, %cst_10 {dimension_numbers = #tpu.dot_dimension_numbers<[1], [0], [0], [1], [0, 0, 1, 1], [], []>} : vector<8x32xf32>, vector<32x32xf32>, vector<8x32xf32> -> vector<8x32xf32>
    %22 = vector.extract_strided_slice %6 {offsets = [32, 0], sizes = [8, 32], strides = [1, 1]} : vector<64x32xf32> to vector<8x32xf32>
    %23 = arith.addf %22, %21 : vector<8x32xf32>
    %24 = math.tanh %23 : vector<8x32xf32>
    %cst_11 = arith.constant dense<0.000000e+00> : vector<8x32xf32>
    %25 = tpu.matmul %24, %0, %cst_11 {dimension_numbers = #tpu.dot_dimension_numbers<[1], [0], [0], [1], [0, 0, 1, 1], [], []>} : vector<8x32xf32>, vector<32x32xf32>, vector<8x32xf32> -> vector<8x32xf32>
    %26 = vector.extract_strided_slice %6 {offsets = [40, 0], sizes = [8, 32], strides = [1, 1]} : vector<64x32xf32> to vector<8x32xf32>
    %27 = arith.addf %26, %25 : vector<8x32xf32>
    %28 = math.tanh %27 : vector<8x32xf32>
    %cst_12 = arith.constant dense<0.000000e+00> : vector<8x32xf32>
    %29 = tpu.matmul %28, %0, %cst_12 {dimension_numbers = #tpu.dot_dimension_numbers<[1], [0], [0], [1], [0, 0, 1, 1], [], []>} : vector<8x32xf32>, vector<32x32xf32>, vector<8x32xf32> -> vector<8x32xf32>
    %30 = vector.extract_strided_slice %6 {offsets = [48, 0], sizes = [8, 32], strides = [1, 1]} : vector<64x32xf32> to vector<8x32xf32>
    %31 = arith.addf %30, %29 : vector<8x32xf32>
    %32 = math.tanh %31 : vector<8x32xf32>
    %cst_13 = arith.constant dense<0.000000e+00> : vector<8x32xf32>
    %33 = tpu.matmul %32, %0, %cst_13 {dimension_numbers = #tpu.dot_dimension_numbers<[1], [0], [0], [1], [0, 0, 1, 1], [], []>} : vector<8x32xf32>, vector<32x32xf32>, vector<8x32xf32> -> vector<8x32xf32>
    %34 = vector.extract_strided_slice %6 {offsets = [56, 0], sizes = [8, 32], strides = [1, 1]} : vector<64x32xf32> to vector<8x32xf32>
    %35 = arith.addf %34, %33 : vector<8x32xf32>
    %36 = math.tanh %35 : vector<8x32xf32>
    %c0_14 = arith.constant 0 : index
    %c0_15 = arith.constant 0 : index
    %37 = vector.load %arg4[%c0_14, %c0_15] : memref<32x128xf32, #tpu.memory_space<vmem>>, vector<32x128xf32>
    %cst_16 = arith.constant dense<0.000000e+00> : vector<8x128xf32>
    %38 = tpu.matmul %36, %37, %cst_16 {dimension_numbers = #tpu.dot_dimension_numbers<[1], [0], [0], [1], [0, 0, 1, 1], [], []>} : vector<8x32xf32>, vector<32x128xf32>, vector<8x128xf32> -> vector<8x128xf32>
    %c0_17 = arith.constant 0 : index
    %c0_18 = arith.constant 0 : index
    %39 = vector.load %arg5[%c0_17, %c0_18] : memref<1x128xf32, #tpu.memory_space<vmem>>, vector<1x128xf32>
    %40 = vector.broadcast %39 : vector<1x128xf32> to vector<8x128xf32>
    %41 = arith.addf %38, %40 : vector<8x128xf32>
    %c0_19 = arith.constant 0 : index
    %c0_20 = arith.constant 0 : index
    %42 = vector.load %arg6[%c0_19, %c0_20] : memref<8x128xf32, #tpu.memory_space<vmem>>, vector<8x128xf32>
    tpu.vector_store %arg6[%c0_19, %c0_20], %41 {strides = array<i32>} : memref<8x128xf32, #tpu.memory_space<vmem>>, vector<8x128xf32>,
    return
  }
}

</mosaic_0001>

<llo_original>
// kernel: forward.1
$region0: #{forward.1}
  #allocation0 [shape = 'u32[]', space=smem, size = 0x4, offset = 0x4, fixed_abs, tag = 'smem constant byte address 0x4 - core index']
  #allocation1 [shape = 'u32[72,128]{1,0:T(1,128)}', space=vmem, size = 0x9000, scoped, tag = 'internal scratch']
  %s0 = inlined_call_operand.vmem [shape: f32[64,8], index: 0, kind: input, shape index: {}]
  %s1 = inlined_call_operand.vmem [shape: f32[8,32], index: 1, kind: input, shape index: {}]
  %s2 = inlined_call_operand.vmem [shape: f32[32,32], index: 2, kind: input, shape index: {}]
  %s3 = inlined_call_operand.vmem [shape: f32[1,32], index: 3, kind: input, shape index: {}]
  %s4 = inlined_call_operand.vmem [shape: f32[32,128], index: 4, kind: input, shape index: {}]
  %s5 = inlined_call_operand.vmem [shape: f32[1,128], index: 5, kind: input, shape index: {}]
  %s6 = inlined_call_operand.vmem [shape: f32[8,128], index: 6, kind: output, shape index: {}]
  %s7 = sld [smem:[#allocation0]]
  $region34: #{forward.1} parent=0
    _
  %s9 = ssub.s32 1, %s7
  %s10 = scalar_select 0, %s9, %s7
  // Predicated region
  $region2: #{forward.1} parent=0 // pred_check
    _
  $region3: #{forward.1} parent=0 // pred_check_branch
    %12 = sbr.rel (0) target = $region5
  $region4: #{forward.1} parent=0 // pred_region
    _
  $region5: #{forward.1} parent=0 // pred_fallthru
    _
  // Predicated region
  $region6: #{forward.1} parent=0 // pred_check
    _
  $region7: #{forward.1} parent=0 // pred_check_branch
    %14 = sbr.rel (0) target = $region9
  $region8: #{forward.1} parent=0 // pred_region
    _
  $region9: #{forward.1} parent=0 // pred_fallthru
    _
  // Predicated region
  $region10: #{forward.1} parent=0 // pred_check
    _
  $region11: #{forward.1} parent=0 // pred_check_branch
    %16 = sbr.rel (0) target = $region13
  $region12: #{forward.1} parent=0 // pred_region
    _
  $region13: #{forward.1} parent=0 // pred_fallthru
    _
  // Predicated region
  $region14: #{forward.1} parent=0 // pred_check
    _
  $region15: #{forward.1} parent=0 // pred_check_branch
    %18 = sbr.rel (0) target = $region17
  $region16: #{forward.1} parent=0 // pred_region
    _
  $region17: #{forward.1} parent=0 // pred_fallthru
    _
  // Predicated region
  $region18: #{forward.1} parent=0 // pred_check
    _
  $region19: #{forward.1} parent=0 // pred_check_branch
    %20 = sbr.rel (0) target = $region21
  $region20: #{forward.1} parent=0 // pred_region
    _
  $region21: #{forward.1} parent=0 // pred_fallthru
    _
  // Predicated region
  $region22: #{forward.1} parent=0 // pred_check
    _
  $region23: #{forward.1} parent=0 // pred_check_branch
    %22 = sbr.rel (0) target = $region25
  $region24: #{forward.1} parent=0 // pred_region
    _
  $region25: #{forward.1} parent=0 // pred_fallthru
    _
  %v23 = vld [vmem:[%s2] sm:$0xff]
  %v24 = vld [vmem:[%s2 + $0x8] sm:$0xff]
  %v25 = vld [vmem:[%s2 + $0x10] sm:$0xff]
  %v26 = vld [vmem:[%s2 + $0x18] sm:$0xff]
  %v27 = vld [vmem:[%s0] sm:$0xff]
  %v28 = vld [vmem:[%s0 + $0x8] sm:$0xff]
  %v29 = vld [vmem:[%s0 + $0x10] sm:$0xff]
  %v30 = vld [vmem:[%s0 + $0x18] sm:$0xff]
  %v31 = vld [vmem:[%s0 + $0x20] sm:$0xff]
  %v32 = vld [vmem:[%s0 + $0x28] sm:$0xff]
  %v33 = vld [vmem:[%s0 + $0x30] sm:$0xff]
  %v34 = vld [vmem:[%s0 + $0x38] sm:$0xff]
  %v35 = vld [vmem:[%s1] sm:$0xff]
  %v36 = vld [vmem:[%s3] sm:$0x1]
  %v38 = vperm.slane %v36, 0
  %vm40 = vcmask 64512
  %v42 = vsel %vm40, %v27, 0
  %v45 = vsel %vm40, %v28, 0
  %v48 = vsel %vm40, %v29, 0
  %v51 = vsel %vm40, %v30, 0
  %v54 = vsel %vm40, %v31, 0
  %v57 = vsel %vm40, %v32, 0
  %v60 = vsel %vm40, %v33, 0
  %v63 = vsel %vm40, %v34, 0
  %65 = vmatpush.msra.mxu0 0.0
  %66 = vmatpush.msra.mxu0 0.0
  %67 = vmatpush.msra.mxu0 0.0
  %68 = vmatpush.msra.mxu0 0.0
  %69 = vmatpush.msra.mxu0 0.0
  %70 = vmatpush.msra.mxu0 0.0
  %71 = vmatpush.msra.mxu0 0.0
  %72 = vmatpush.msra.mxu0 0.0
  %73 = vmatpush.msra.mxu0 0.0
  %74 = vmatpush.msra.mxu0 0.0
  %75 = vmatpush.msra.mxu0 0.0
  %76 = vmatpush.msra.mxu0 0.0
  %77 = vmatpush.msra.mxu0 0.0
  %78 = vmatpush.msra.mxu0 0.0
  %79 = vmatpush.msra.mxu0 0.0
  %80 = vmatpush.msra.mxu0 %v35
  %81 = vmatmul.f32.gmra.mxu0 %v42
  %v82 = vpop.f32.mrf.mxu0
  %v83 = vadd.f32 %v38, %v82
  %84 = vmatmul.f32.gmra.mxu0 %v45
  %v85 = vpop.f32.mrf.mxu0
  %v86 = vadd.f32 %v38, %v85
  %87 = vmatmul.f32.gmra.mxu0 %v48
  %v88 = vpop.f32.mrf.mxu0
  %v89 = vadd.f32 %v38, %v88
  %90 = vmatmul.f32.gmra.mxu0 %v51
  %v91 = vpop.f32.mrf.mxu0
  %v92 = vadd.f32 %v38, %v91
  %93 = vmatmul.f32.gmra.mxu0 %v54
  %v94 = vpop.f32.mrf.mxu0
  %v95 = vadd.f32 %v38, %v94
  %96 = vmatmul.f32.gmra.mxu0 %v57
  %v97 = vpop.f32.mrf.mxu0
  %v98 = vadd.f32 %v38, %v97
  %99 = vmatmul.f32.gmra.mxu0 %v60
  %v100 = vpop.f32.mrf.mxu0
  %v101 = vadd.f32 %v38, %v100
  %102 = vmatmul.f32.gmra.mxu0 %v63
  %v103 = vpop.f32.mrf.mxu0
  %v104 = vadd.f32 %v38, %v103
  %105 = vdwg.mxu0
  %v106 = vtanh.pop %v83
  %vm107 = vcmask 261120
  %v109 = vsel %vm107, %v106, 0
  %111 = vmatpush.msra.mxu0 0.0
  %112 = vmatpush.msra.mxu0 0.0
  %113 = vmatpush.msra.mxu0 0.0
  %114 = vmatpush.msra.mxu0 0.0
  %115 = vmatpush.msra.mxu0 0.0
  %116 = vmatpush.msra.mxu0 0.0
  %117 = vmatpush.msra.mxu0 0.0
  %118 = vmatpush.msra.mxu0 0.0
  %119 = vmatpush.msra.mxu0 0.0
  %120 = vmatpush.msra.mxu0 0.0
  %121 = vmatpush.msra.mxu0 0.0
  %122 = vmatpush.msra.mxu0 0.0
  %123 = vmatpush.msra.mxu0 %v26
  %124 = vmatpush.msra.mxu0 %v25
  %125 = vmatpush.msra.mxu0 %v24
  %126 = vmatpush.msra.mxu0 %v23
  %127 = vmatmul.f32.gmra.mxu0 %v109
  %v128 = vpop.f32.mrf.mxu0
  %v129 = vadd.f32 0.0, %v128
  %130 = vdwg.mxu0
  %v131 = vadd.f32 %v86, %v129
  %v132 = vtanh.pop %v131
  %v134 = vsel %vm107, %v132, 0
  %136 = vmatpush.msra.mxu0 0.0
  %137 = vmatpush.msra.mxu0 0.0
  %138 = vmatpush.msra.mxu0 0.0
  %139 = vmatpush.msra.mxu0 0.0
  %140 = vmatpush.msra.mxu0 0.0
  %141 = vmatpush.msra.mxu0 0.0
  %142 = vmatpush.msra.mxu0 0.0
  %143 = vmatpush.msra.mxu0 0.0
  %144 = vmatpush.msra.mxu0 0.0
  %145 = vmatpush.msra.mxu0 0.0
  %146 = vmatpush.msra.mxu0 0.0
  %147 = vmatpush.msra.mxu0 0.0
  %148 = vmatpush.msra.mxu0 %v26
  %149 = vmatpush.msra.mxu0 %v25
  %150 = vmatpush.msra.mxu0 %v24
  %151 = vmatpush.msra.mxu0 %v23
  %152 = vmatmul.f32.gmra.mxu0 %v134
  %v153 = vpop.f32.mrf.mxu0
  %v154 = vadd.f32 0.0, %v153
  %155 = vdwg.mxu0
  %v156 = vadd.f32 %v89, %v154
  %v157 = vtanh.pop %v156
  %v159 = vsel %vm107, %v157, 0
  %161 = vmatpush.msra.mxu0 0.0
  %162 = vmatpush.msra.mxu0 0.0
  %163 = vmatpush.msra.mxu0 0.0
  %164 = vmatpush.msra.mxu0 0.0
  %165 = vmatpush.msra.mxu0 0.0
  %166 = vmatpush.msra.mxu0 0.0
  %167 = vmatpush.msra.mxu0 0.0
  %168 = vmatpush.msra.mxu0 0.0
  %169 = vmatpush.msra.mxu0 0.0
  %170 = vmatpush.msra.mxu0 0.0
  %171 = vmatpush.msra.mxu0 0.0
  %172 = vmatpush.msra.mxu0 0.0
  %173 = vmatpush.msra.mxu0 %v26
  %174 = vmatpush.msra.mxu0 %v25
  %175 = vmatpush.msra.mxu0 %v24
  %176 = vmatpush.msra.mxu0 %v23
  %177 = vmatmul.f32.gmra.mxu0 %v159
  %v178 = vpop.f32.mrf.mxu0
  %v179 = vadd.f32 0.0, %v178
  %180 = vdwg.mxu0
  %v181 = vadd.f32 %v92, %v179
  %v182 = vtanh.pop %v181
  %v184 = vsel %vm107, %v182, 0
  %186 = vmatpush.msra.mxu0 0.0
  %187 = vmatpush.msra.mxu0 0.0
  %188 = vmatpush.msra.mxu0 0.0
  %189 = vmatpush.msra.mxu0 0.0
  %190 = vmatpush.msra.mxu0 0.0
  %191 = vmatpush.msra.mxu0 0.0
  %192 = vmatpush.msra.mxu0 0.0
  %193 = vmatpush.msra.mxu0 0.0
  %194 = vmatpush.msra.mxu0 0.0
  %195 = vmatpush.msra.mxu0 0.0
  %196 = vmatpush.msra.mxu0 0.0
  %197 = vmatpush.msra.mxu0 0.0
  %198 = vmatpush.msra.mxu0 %v26
  %199 = vmatpush.msra.mxu0 %v25
  %200 = vmatpush.msra.mxu0 %v24
  %201 = vmatpush.msra.mxu0 %v23
  %202 = vmatmul.f32.gmra.mxu0 %v184
  %v203 = vpop.f32.mrf.mxu0
  %v204 = vadd.f32 0.0, %v203
  %205 = vdwg.mxu0
  %v206 = vadd.f32 %v95, %v204
  %v207 = vtanh.pop %v206
  %v209 = vsel %vm107, %v207, 0
  %211 = vmatpush.msra.mxu0 0.0
  %212 = vmatpush.msra.mxu0 0.0
  %213 = vmatpush.msra.mxu0 0.0
  %214 = vmatpush.msra.mxu0 0.0
  %215 = vmatpush.msra.mxu0 0.0
  %216 = vmatpush.msra.mxu0 0.0
  %217 = vmatpush.msra.mxu0 0.0
  %218 = vmatpush.msra.mxu0 0.0
  %219 = vmatpush.msra.mxu0 0.0
  %220 = vmatpush.msra.mxu0 0.0
  %221 = vmatpush.msra.mxu0 0.0
  %222 = vmatpush.msra.mxu0 0.0
  %223 = vmatpush.msra.mxu0 %v26
  %224 = vmatpush.msra.mxu0 %v25
  %225 = vmatpush.msra.mxu0 %v24
  %226 = vmatpush.msra.mxu0 %v23
  %227 = vmatmul.f32.gmra.mxu0 %v209
  %v228 = vpop.f32.mrf.mxu0
  %v229 = vadd.f32 0.0, %v228
  %230 = vdwg.mxu0
  %v231 = vadd.f32 %v98, %v229
  %v232 = vtanh.pop %v231
  %v234 = vsel %vm107, %v232, 0
  %236 = vmatpush.msra.mxu0 0.0
  %237 = vmatpush.msra.mxu0 0.0
  %238 = vmatpush.msra.mxu0 0.0
  %239 = vmatpush.msra.mxu0 0.0
  %240 = vmatpush.msra.mxu0 0.0
  %241 = vmatpush.msra.mxu0 0.0
  %242 = vmatpush.msra.mxu0 0.0
  %243 = vmatpush.msra.mxu0 0.0
  %244 = vmatpush.msra.mxu0 0.0
  %245 = vmatpush.msra.mxu0 0.0
  %246 = vmatpush.msra.mxu0 0.0
  %247 = vmatpush.msra.mxu0 0.0
  %248 = vmatpush.msra.mxu0 %v26
  %249 = vmatpush.msra.mxu0 %v25
  %250 = vmatpush.msra.mxu0 %v24
  %251 = vmatpush.msra.mxu0 %v23
  %252 = vmatmul.f32.gmra.mxu0 %v234
  %v253 = vpop.f32.mrf.mxu0
  %v254 = vadd.f32 0.0, %v253
  %255 = vdwg.mxu0
  %v256 = vadd.f32 %v101, %v254
  %v257 = vtanh.pop %v256
  %v259 = vsel %vm107, %v257, 0
  %261 = vmatpush.msra.mxu0 0.0
  %262 = vmatpush.msra.mxu0 0.0
  %263 = vmatpush.msra.mxu0 0.0
  %264 = vmatpush.msra.mxu0 0.0
  %265 = vmatpush.msra.mxu0 0.0
  %266 = vmatpush.msra.mxu0 0.0
  %267 = vmatpush.msra.mxu0 0.0
  %268 = vmatpush.msra.mxu0 0.0
  %269 = vmatpush.msra.mxu0 0.0
  %270 = vmatpush.msra.mxu0 0.0
  %271 = vmatpush.msra.mxu0 0.0
  %272 = vmatpush.msra.mxu0 0.0
  %273 = vmatpush.msra.mxu0 %v26
  %274 = vmatpush.msra.mxu0 %v25
  %275 = vmatpush.msra.mxu0 %v24
  %276 = vmatpush.msra.mxu0 %v23
  %277 = vmatmul.f32.gmra.mxu0 %v259
  %v278 = vpop.f32.mrf.mxu0
  %v279 = vadd.f32 0.0, %v278
  %280 = vdwg.mxu0
  %v281 = vadd.f32 %v104, %v279
  %v282 = vtanh.pop %v281
  %v283 = vld [vmem:[%s4] sm:$0xff]
  %v284 = vld [vmem:[%s4 + $0x8] sm:$0xff]
  %v285 = vld [vmem:[%s4 + $0x10] sm:$0xff]
  %v286 = vld [vmem:[%s4 + $0x18] sm:$0xff]
  %v287 = vld [vmem:[%s5] sm:$0x1]
  %v289 = vperm.slane %v287, 0
  %v292 = vsel %vm107, %v282, 0
  %294 = vmatpush.msra.mxu0 0.0
  %295 = vmatpush.msra.mxu0 0.0
  %296 = vmatpush.msra.mxu0 0.0
  %297 = vmatpush.msra.mxu0 0.0
  %298 = vmatpush.msra.mxu0 0.0
  %299 = vmatpush.msra.mxu0 0.0
  %300 = vmatpush.msra.mxu0 0.0
  %301 = vmatpush.msra.mxu0 0.0
  %302 = vmatpush.msra.mxu0 0.0
  %303 = vmatpush.msra.mxu0 0.0
  %304 = vmatpush.msra.mxu0 0.0
  %305 = vmatpush.msra.mxu0 0.0
  %306 = vmatpush.msra.mxu0 %v286
  %307 = vmatpush.msra.mxu0 %v285
  %308 = vmatpush.msra.mxu0 %v284
  %309 = vmatpush.msra.mxu0 %v283
  %310 = vmatmul.f32.gmra.mxu0 %v292
  %v311 = vpop.f32.mrf.mxu0
  %v312 = vadd.f32 %v289, %v311
  %313 = vdwg.mxu0
  %314 = vst [vmem:[%s6] sm:$0xff] %v312
  // Predicated region
  $region26: #{forward.1} parent=0 // pred_check
    _
  $region27: #{forward.1} parent=0 // pred_check_branch
    %316 = sbr.rel (0) target = $region29
  $region28: #{forward.1} parent=0 // pred_region
    _
  $region29: #{forward.1} parent=0 // pred_fallthru
    _
  // Predicated region
  $region30: #{forward.1} parent=0 // pred_check
    _
  $region31: #{forward.1} parent=0 // pred_check_branch
    %318 = sbr.rel (0) target = $region33
  $region32: #{forward.1} parent=0 // pred_region
    _
  $region33: #{forward.1} parent=0 // pred_fallthru
    _

</llo_original>
